<compile_context>
chip_gen: v5e
topology: v5e:2x2
jax: 0.10.0
libtpu: 0.0.40
codegen_flags: <defaults>
</compile_context>

<pallas_src>
import functools

import jax
import jax.numpy as jnp
from jax import lax
from jax.experimental import pallas as pl
from jax.experimental.pallas import tpu as pltpu

B_PAD = 8          # sublane-pad the batch dim to the 8-row vreg geometry
SLAB_LANES = 128   # lane-dense output slab width (one vreg of lanes)


# ----------------------------------------------------------------------------
# Fused kernel: stand-in encoders + CLIPModel.forward post-encoder hot path
# ----------------------------------------------------------------------------
def clip_fused_kernel(x_img_ref, w_img_ref, cnt_ref, tok_ref, w_txt_ref,
                      mask_ref, out_ref, *, batch, ncls, b_pad):
    f32 = jnp.float32

    # ---- stand-in encoders (bf16 operands on the MXU, f32 accumulation) ----
    # TODO(synk): for real CLIP encoder sizes these dots must be tiled on an
    # (M, N, K) grid with an f32 VMEM accumulator and per-chip tile sizing
    # (v7x: 64 MiB VMEM, 2 TCs -> "parallel" batch axis + vmem_limit_bytes).
    img = jnp.dot(x_img_ref[...], w_img_ref[...],
                  preferred_element_type=f32)                       # (b_pad, D)

    # text: mean-pool == (token-count matrix) @ tok_emb, then the shared
    # linear projection.  Row layout: [0, b_pad) = titles; [b_pad, b_pad+C*B)
    # = class prompts laid out class-major (row = b_pad + c*batch + j).
    pooled = jnp.dot(cnt_ref[...], tok_ref[...],
                     preferred_element_type=f32)                    # (rows_pad, E)
    txt_all = jnp.dot(pooled.astype(jnp.bfloat16), w_txt_ref[...],
                      preferred_element_type=f32)                   # (rows_pad, D)
    title = txt_all[:b_pad, :]                                      # (b_pad, D)
    txt = txt_all[b_pad:b_pad + ncls * batch, :]                    # (C*B, D)

    # ---- L2 normalization (rsqrt on EUP; eps keeps padded rows finite) -----
    eps = 1e-12
    img_n = img * lax.rsqrt(jnp.sum(img * img, axis=-1, keepdims=True) + eps)
    title_n = title * lax.rsqrt(jnp.sum(title * title, axis=-1, keepdims=True) + eps)
    txt_n = txt * lax.rsqrt(jnp.sum(txt * txt, axis=-1, keepdims=True) + eps)

    # ---- ONE Gram-matrix MXU dot for all four similarities -----------------
    # lhs = [img_n; title_n] (2*b_pad, D), rhs = [img_n; title_n; txt_n];
    # g[i, j] = lhs[i] . rhs[j] — logits / img_sim / title_sim / prod are
    # contiguous static slices of g (no per-similarity MXU push/drain).
    lhs = jnp.concatenate([img_n, title_n], axis=0)
    rhs = jnp.concatenate([img_n, title_n, txt_n], axis=0)
    dn = (((1,), (1,)), ((), ()))
    g = lax.dot_general(lhs, rhs, dn, preferred_element_type=f32)   # (2*b_pad, 2*b_pad+C*B)

    img_sim = g[0:b_pad, 0:b_pad]
    logits = g[0:b_pad, b_pad:2 * b_pad]
    title_sim = g[b_pad:2 * b_pad, b_pad:2 * b_pad]

    # ---- target = softmax((img_sim + title_sim)/2); mask padded columns ----
    s = (img_sim + title_sim) * 0.5
    col = lax.broadcasted_iota(jnp.int32, s.shape, 1)
    s = jnp.where(col < batch, s, -1e30)
    s = s - jnp.max(s, axis=-1, keepdims=True)
    e = jnp.exp(s)
    target = e * pl.reciprocal(jnp.sum(e, axis=-1, keepdims=True), approx=True)

    # ---- prod[i, j, c] lives at g[i, 2*b_pad + c*batch + j] -----------------
    base = 2 * b_pad
    max_sim = g[0:b_pad, base:base + batch]          # class c = 0 block
    min_raw = max_sim
    for c in range(1, ncls):                         # contiguous lane slices
        blk = g[0:b_pad, base + c * batch:base + (c + 1) * batch]
        max_sim = jnp.maximum(max_sim, blk)
        min_raw = jnp.minimum(min_raw, blk)
    min_sim = -min_raw                               # amin(prod, dim=2) * -1
    # min_sim[i, class_idx] = max_sim[i, class_idx] (host-precomputed 0/1 mask,
    # matching the Python loop over `names`/`classes` in the torch module).
    mask = mask_ref[...]                             # 128-lane, unmasked load
    y_pred = jnp.where(mask[:, 0:batch] > 0.5, max_sim, min_sim)
    mil_soft = pl.reciprocal(1.0 + jnp.exp(-y_pred), approx=True)   # F.sigmoid

    # ---- pack everything into one lane-dense slab, single unmasked store ---
    pad = jnp.zeros((b_pad, SLAB_LANES - 2 * b_pad - 2 * batch), f32)
    out_ref[...] = jnp.concatenate([logits, target, y_pred, mil_soft, pad], axis=1)


def clip_fused(x_img, w_img, cnt_all, tok_emb, w_txt, mask_pad, *, batch, ncls):
    b_pad = x_img.shape[0]
    d = w_img.shape[1]
    kernel = functools.partial(clip_fused_kernel, batch=batch, ncls=ncls, b_pad=b_pad)

    flops = 2 * (x_img.shape[0] * x_img.shape[1] * d
                 + cnt_all.shape[0] * cnt_all.shape[1] * tok_emb.shape[1]
                 + cnt_all.shape[0] * tok_emb.shape[1] * w_txt.shape[1]
                 + (2 * b_pad) * (2 * b_pad + ncls * batch) * d)
    transcendentals = (b_pad * b_pad            # softmax exp
                       + 2 * b_pad * batch      # sigmoid exp + reciprocal
                       + 2 * b_pad + ncls * batch   # rsqrt norms
                       + b_pad)                 # softmax reciprocal
    bytes_accessed = sum(int(a.size) * a.dtype.itemsize
                         for a in (x_img, w_img, cnt_all, tok_emb, w_txt, mask_pad))
    bytes_accessed += b_pad * SLAB_LANES * 4

    vmem_spec = pl.BlockSpec(memory_space=pltpu.MemorySpace.VMEM)
    return pl.pallas_call(
        kernel,
        out_shape=jax.ShapeDtypeStruct((b_pad, SLAB_LANES), jnp.float32),
        in_specs=[vmem_spec] * 6,                 # no grid -> single-buffered
        out_specs=vmem_spec,
        cost_estimate=pl.CostEstimate(flops=flops,
                                      transcendentals=transcendentals,
                                      bytes_accessed=bytes_accessed),
    )(x_img, w_img, cnt_all, tok_emb, w_txt, mask_pad)


# ----------------------------------------------------------------------------
# Wrapper (glue: count-matrix construction, padding, output un-packing)
# ----------------------------------------------------------------------------
def clip_model_forward(params, imgs, lst_tokens, titles, class_mask):
    # args.projection_layer == False -> ProjectionHead is skipped.
    # TODO(synk): ProjectionHead / PatchProjection are not defined in the given
    # source; omitted (projection_layer=False path).
    b = imgs.shape[0]
    ncls = lst_tokens.shape[1]
    assert b == ncls, "original forward() requires txt batch == len(classes)"
    assert b <= B_PAD

    vocab = params["tok_emb"].shape[0]

    # image pixels, NCHW -> (B, 3*H*W), sublane-padded to 8 rows, bf16 for MXU
    x_img = imgs.reshape(b, -1)
    x_img = jnp.pad(x_img, ((0, B_PAD - b), (0, 0))).astype(jnp.bfloat16)

    # TODO(synk): model.encode_text is a full transformer; stand-in is a
    # token mean-pool + shared linear layer, both computed INSIDE the kernel
    # (the wrapper only builds the exact token-count matrix).
    def counts(tokens):
        # (rows, L) int tokens -> (rows, V) mean one-hot counts (exact in bf16)
        return jnp.mean(jax.nn.one_hot(tokens, vocab, dtype=jnp.float32), axis=1)

    title_cnt = jnp.pad(counts(titles), ((0, B_PAD - b), (0, 0)))     # (B_PAD, V)
    # class prompts laid out CLASS-MAJOR (row = c*B + j) so the kernel reduces
    # over classes with contiguous lane slices (no reshape/concat of txt rows).
    prompts = jnp.transpose(lst_tokens, (1, 0, 2)).reshape(ncls * b, -1)
    prompt_cnt = counts(prompts)                                      # (C*B, V)
    rows = B_PAD + ncls * b
    rows_pad = ((rows + 15) // 16) * 16       # bf16 sublane-pack alignment
    cnt_all = jnp.concatenate([title_cnt, prompt_cnt], axis=0)
    cnt_all = jnp.pad(cnt_all, ((0, rows_pad - rows), (0, 0))).astype(jnp.bfloat16)

    # mask padded to 128 lanes so its in-kernel load is unmasked
    mask_pad = jnp.pad(class_mask.astype(jnp.float32),
                       ((0, B_PAD - b), (0, SLAB_LANES - ncls)))

    slab = clip_fused(x_img, params["w_img"].astype(jnp.bfloat16), cnt_all,
                      params["tok_emb"].astype(jnp.bfloat16),
                      params["w_txt"].astype(jnp.bfloat16),
                      mask_pad, batch=b, ncls=ncls)

    logits = slab[:b, 0:b]
    target = slab[:b, B_PAD:B_PAD + b]
    y_pred = slab[:b, 2 * B_PAD:2 * B_PAD + b]
    mil_softmax_targets = slab[:b, 2 * B_PAD + b:2 * B_PAD + 2 * b]
    mil_targets = class_mask.astype(jnp.float32)   # == the torch zeros/scatter loop
    return logits, target, y_pred, mil_targets, mil_softmax_targets


# ----------------------------------------------------------------------------
# Pure-JAX f32 reference (same stand-in encoders) for a sanity check
# ----------------------------------------------------------------------------
def reference_forward(params, imgs, lst_tokens, titles, class_mask):
    b = imgs.shape[0]
    ncls = lst_tokens.shape[1]
    img = imgs.reshape(b, -1) @ params["w_img"]

    def pool(tokens):
        return jnp.mean(jnp.take(params["tok_emb"], tokens, axis=0), axis=1)

    title = pool(titles) @ params["w_txt"]
    txt = (pool(lst_tokens.reshape(b * ncls, -1)) @ params["w_txt"]).reshape(b, ncls, -1)

    def l2n(v):
        return v / jnp.linalg.norm(v, axis=-1, keepdims=True)

    img_n, title_n, txt_n = l2n(img), l2n(title), l2n(txt)
    logits = img_n @ title_n.T
    target = jax.nn.softmax((img_n @ img_n.T + title_n @ title_n.T) / 2.0, axis=-1)
    prod = jnp.einsum("id,jcd->ijc", img_n, txt_n)
    max_sim = jnp.max(prod, axis=2)
    min_sim = -jnp.min(prod, axis=2)
    y_pred = jnp.where(class_mask > 0.5, max_sim, min_sim)
    return logits, target, y_pred, class_mask.astype(jnp.float32), jax.nn.sigmoid(y_pred)


# ----------------------------------------------------------------------------
if __name__ == "__main__":
    B = 4                 # batch size
    NUM_CLASSES = 4       # must equal B for the original forward()'s indexing
    C_IMG, H, W = 3, 16, 16
    L, V, E, D = 8, 64, 128, 128

    key = jax.random.PRNGKey(0)
    ks = jax.random.split(key, 6)

    imgs = jax.random.normal(ks[0], (B, C_IMG, H, W), jnp.float32)   # NCHW
    titles = jax.random.randint(ks[1], (B, L), 0, V)
    lst_tokens = jax.random.randint(ks[2], (B, NUM_CLASSES, L), 0, V)

    params = {
        "w_img": jax.random.normal(ks[3], (C_IMG * H * W, D), jnp.float32) * 0.02,
        "tok_emb": jax.random.normal(ks[4], (V, E), jnp.float32) * 0.02,
        "w_txt": jax.random.normal(ks[5], (E, D), jnp.float32) * 0.02,
    }

    # Host-side string matching of `names` against `classes` (same as the
    # Python list comprehension in the torch module), materialized as a mask.
    classes = ["cat", "dog", "car", "tree"]
    names = ["a cat and a dog", "red car", "tall tree", "dog near a tree"]
    indices = [[i for i, c in enumerate(classes) if c in row] for row in names]
    class_mask = jnp.asarray(
        [[1.0 if j in row else 0.0 for j in range(NUM_CLASSES)] for row in indices],
        dtype=jnp.float32)

    outs = clip_model_forward(params, imgs, lst_tokens, titles, class_mask)
    outs = jax.block_until_ready(outs)
    logits, target, y_pred, mil_targets, mil_softmax_targets = outs
    assert logits.shape == (B, B)
    assert target.shape == (B, B)
    assert y_pred.shape == (B, B)
    assert mil_targets.shape == (B, NUM_CLASSES)
    assert mil_softmax_targets.shape == (B, B)

    ref = reference_forward(params, imgs, lst_tokens, titles, class_mask)
    for got, want in zip(outs, ref):
        assert float(jnp.max(jnp.abs(got - want))) < 5e-2

    print("KERNEL_OK")
</pallas_src>

<mosaic_0001>
module attributes {stable_mosaic.version = 11 : i64} {
  func.func @clip_fused_kernel(%arg0: memref<8x768xbf16, #tpu.memory_space<vmem>>, %arg1: memref<768x128xbf16, #tpu.memory_space<vmem>>, %arg2: memref<32x64xbf16, #tpu.memory_space<vmem>>, %arg3: memref<64x128xbf16, #tpu.memory_space<vmem>>, %arg4: memref<128x128xbf16, #tpu.memory_space<vmem>>, %arg5: memref<8x128xf32, #tpu.memory_space<vmem>>, %arg6: memref<8x128xf32, #tpu.memory_space<vmem>>) attributes {dimension_semantics = [], scalar_prefetch = 0 : i64, scratch_operands = 0 : i64, tpu.core_type = #tpu.core_type<tc>} {
    %c0 = arith.constant 0 : index
    %c0_0 = arith.constant 0 : index
    %0 = vector.load %arg0[%c0, %c0_0] : memref<8x768xbf16, #tpu.memory_space<vmem>>, vector<8x768xbf16>
    %c0_1 = arith.constant 0 : index
    %c0_2 = arith.constant 0 : index
    %1 = vector.load %arg1[%c0_1, %c0_2] : memref<768x128xbf16, #tpu.memory_space<vmem>>, vector<768x128xbf16>
    %cst = arith.constant dense<0.000000e+00> : vector<8x128xf32>
    %2 = tpu.matmul %0, %1, %cst {dimension_numbers = #tpu.dot_dimension_numbers<[1], [0], [0], [1], [0, 0, 1, 1], [], []>} : vector<8x768xbf16>, vector<768x128xbf16>, vector<8x128xf32> -> vector<8x128xf32>
    %c0_3 = arith.constant 0 : index
    %c0_4 = arith.constant 0 : index
    %3 = vector.load %arg2[%c0_3, %c0_4] : memref<32x64xbf16, #tpu.memory_space<vmem>>, vector<32x64xbf16>
    %c0_5 = arith.constant 0 : index
    %c0_6 = arith.constant 0 : index
    %4 = vector.load %arg3[%c0_5, %c0_6] : memref<64x128xbf16, #tpu.memory_space<vmem>>, vector<64x128xbf16>
    %cst_7 = arith.constant dense<0.000000e+00> : vector<32x128xf32>
    %5 = tpu.matmul %3, %4, %cst_7 {dimension_numbers = #tpu.dot_dimension_numbers<[1], [0], [0], [1], [0, 0, 1, 1], [], []>} : vector<32x64xbf16>, vector<64x128xbf16>, vector<32x128xf32> -> vector<32x128xf32>
    %6 = arith.truncf %5 : vector<32x128xf32> to vector<32x128xbf16>
    %c0_8 = arith.constant 0 : index
    %c0_9 = arith.constant 0 : index
    %7 = vector.load %arg4[%c0_8, %c0_9] : memref<128x128xbf16, #tpu.memory_space<vmem>>, vector<128x128xbf16>
    %cst_10 = arith.constant dense<0.000000e+00> : vector<32x128xf32>
    %8 = tpu.matmul %6, %7, %cst_10 {dimension_numbers = #tpu.dot_dimension_numbers<[1], [0], [0], [1], [0, 0, 1, 1], [], []>} : vector<32x128xbf16>, vector<128x128xbf16>, vector<32x128xf32> -> vector<32x128xf32>
    %9 = vector.extract_strided_slice %8 {offsets = [0, 0], sizes = [8, 128], strides = [1, 1]} : vector<32x128xf32> to vector<8x128xf32>
    %10 = vector.extract_strided_slice %8 {offsets = [8, 0], sizes = [16, 128], strides = [1, 1]} : vector<32x128xf32> to vector<16x128xf32>
    %11 = arith.mulf %2, %2 : vector<8x128xf32>
    %cst_11 = arith.constant dense<0.000000e+00> : vector<8xf32>
    %12 = vector.multi_reduction <add>, %11, %cst_11 [1] : vector<8x128xf32> to vector<8xf32>
    %13 = vector.shape_cast %12 : vector<8xf32> to vector<8x1xf32>
    %cst_12 = arith.constant 9.99999996E-13 : f32
    %14 = vector.broadcast %cst_12 : f32 to vector<8x1xf32>
    %15 = arith.addf %13, %14 : vector<8x1xf32>
    %16 = math.rsqrt %15 : vector<8x1xf32>
    %17 = vector.broadcast %16 : vector<8x1xf32> to vector<8x128xf32>
    %18 = arith.mulf %2, %17 : vector<8x128xf32>
    %19 = arith.mulf %9, %9 : vector<8x128xf32>
    %cst_13 = arith.constant dense<0.000000e+00> : vector<8xf32>
    %20 = vector.multi_reduction <add>, %19, %cst_13 [1] : vector<8x128xf32> to vector<8xf32>
    %21 = vector.shape_cast %20 : vector<8xf32> to vector<8x1xf32>
    %cst_14 = arith.constant 9.99999996E-13 : f32
    %22 = vector.broadcast %cst_14 : f32 to vector<8x1xf32>
    %23 = arith.addf %21, %22 : vector<8x1xf32>
    %24 = math.rsqrt %23 : vector<8x1xf32>
    %25 = vector.broadcast %24 : vector<8x1xf32> to vector<8x128xf32>
    %26 = arith.mulf %9, %25 : vector<8x128xf32>
    %27 = arith.mulf %10, %10 : vector<16x128xf32>
    %cst_15 = arith.constant dense<0.000000e+00> : vector<16xf32>
    %28 = vector.multi_reduction <add>, %27, %cst_15 [1] : vector<16x128xf32> to vector<16xf32>
    %29 = vector.shape_cast %28 : vector<16xf32> to vector<16x1xf32>
    %cst_16 = arith.constant 9.99999996E-13 : f32
    %30 = vector.broadcast %cst_16 : f32 to vector<16x1xf32>
    %31 = arith.addf %29, %30 : vector<16x1xf32>
    %32 = math.rsqrt %31 : vector<16x1xf32>
    %33 = vector.broadcast %32 : vector<16x1xf32> to vector<16x128xf32>
    %34 = arith.mulf %10, %33 : vector<16x128xf32>
    %35 = tpu.concatenate %18, %26 in 0 : vector<8x128xf32>, vector<8x128xf32> -> vector<16x128xf32>
    %36 = tpu.concatenate %18, %26, %34 in 0 : vector<8x128xf32>, vector<8x128xf32>, vector<16x128xf32> -> vector<32x128xf32>
    %cst_17 = arith.constant dense<0.000000e+00> : vector<16x32xf32>
    %37 = tpu.matmul %35, %36, %cst_17 {dimension_numbers = #tpu.dot_dimension_numbers<[1], [1], [0], [0], [0, 0, 1, 0], [], []>} : vector<16x128xf32>, vector<32x128xf32>, vector<16x32xf32> -> vector<16x32xf32>
    %38 = vector.extract_strided_slice %37 {offsets = [0, 0], sizes = [8, 8], strides = [1, 1]} : vector<16x32xf32> to vector<8x8xf32>
    %39 = vector.extract_strided_slice %37 {offsets = [0, 8], sizes = [8, 8], strides = [1, 1]} : vector<16x32xf32> to vector<8x8xf32>
    %40 = vector.extract_strided_slice %37 {offsets = [8, 8], sizes = [8, 8], strides = [1, 1]} : vector<16x32xf32> to vector<8x8xf32>
    %41 = arith.addf %38, %40 : vector<8x8xf32>
    %cst_18 = arith.constant 5.000000e-01 : f32
    %42 = vector.broadcast %cst_18 : f32 to vector<8x8xf32>
    %43 = arith.mulf %41, %42 : vector<8x8xf32>
    %44 = tpu.iota {dimensions = array<i32: 1>} : vector<8x8xi32>
    %c4_i32 = arith.constant 4 : i32
    %45 = vector.broadcast %c4_i32 : i32 to vector<8x8xi32>
    %46 = arith.cmpi slt, %44, %45 : vector<8x8xi32>
    %cst_19 = arith.constant -1.000000e+30 : f32
    %47 = vector.broadcast %cst_19 : f32 to vector<8x8xf32>
    %48 = arith.select %46, %43, %47 : vector<8x8xi1>, vector<8x8xf32>
    %cst_20 = arith.constant dense<0xFF800000> : vector<8xf32>
    %49 = vector.multi_reduction <maximumf>, %48, %cst_20 [1] : vector<8x8xf32> to vector<8xf32>
    %50 = vector.shape_cast %49 : vector<8xf32> to vector<8x1xf32>
    %51 = vector.broadcast %50 : vector<8x1xf32> to vector<8x8xf32>
    %52 = arith.subf %48, %51 : vector<8x8xf32>
    %53 = math.exp %52 : vector<8x8xf32>
    %cst_21 = arith.constant dense<0.000000e+00> : vector<8xf32>
    %54 = vector.multi_reduction <add>, %53, %cst_21 [1] : vector<8x8xf32> to vector<8xf32>
    %55 = vector.shape_cast %54 : vector<8xf32> to vector<8x1xf32>
    %56 = tpu.reciprocal %55 {approx = true} : vector<8x1xf32> -> vector<8x1xf32>
    %57 = vector.broadcast %56 : vector<8x1xf32> to vector<8x8xf32>
    %58 = arith.mulf %53, %57 : vector<8x8xf32>
    %59 = vector.extract_strided_slice %37 {offsets = [0, 16], sizes = [8, 4], strides = [1, 1]} : vector<16x32xf32> to vector<8x4xf32>
    %60 = vector.extract_strided_slice %37 {offsets = [0, 20], sizes = [8, 4], strides = [1, 1]} : vector<16x32xf32> to vector<8x4xf32>
    %61 = arith.maximumf %59, %60 : vector<8x4xf32>
    %62 = arith.minimumf %59, %60 : vector<8x4xf32>
    %63 = vector.extract_strided_slice %37 {offsets = [0, 24], sizes = [8, 4], strides = [1, 1]} : vector<16x32xf32> to vector<8x4xf32>
    %64 = arith.maximumf %61, %63 : vector<8x4xf32>
    %65 = arith.minimumf %62, %63 : vector<8x4xf32>
    %66 = vector.extract_strided_slice %37 {offsets = [0, 28], sizes = [8, 4], strides = [1, 1]} : vector<16x32xf32> to vector<8x4xf32>
    %67 = arith.maximumf %64, %66 : vector<8x4xf32>
    %68 = arith.minimumf %65, %66 : vector<8x4xf32>
    %cst_22 = arith.constant 0.000000e+00 : f32
    %69 = vector.broadcast %cst_22 : f32 to vector<8x4xf32>
    %70 = arith.subf %69, %68 : vector<8x4xf32>
    %c0_23 = arith.constant 0 : index
    %c0_24 = arith.constant 0 : index
    %71 = vector.load %arg5[%c0_23, %c0_24] : memref<8x128xf32, #tpu.memory_space<vmem>>, vector<8x128xf32>
    %72 = vector.extract_strided_slice %71 {offsets = [0, 0], sizes = [8, 4], strides = [1, 1]} : vector<8x128xf32> to vector<8x4xf32>
    %cst_25 = arith.constant 5.000000e-01 : f32
    %73 = vector.broadcast %cst_25 : f32 to vector<8x4xf32>
    %74 = arith.cmpf ogt, %72, %73 : vector<8x4xf32>
    %75 = arith.select %74, %67, %70 : vector<8x4xi1>, vector<8x4xf32>
    %cst_26 = arith.constant 0.000000e+00 : f32
    %76 = vector.broadcast %cst_26 : f32 to vector<8x4xf32>
    %77 = arith.subf %76, %75 : vector<8x4xf32>
    %78 = math.exp %77 : vector<8x4xf32>
    %cst_27 = arith.constant 1.000000e+00 : f32
    %79 = vector.broadcast %cst_27 : f32 to vector<8x4xf32>
    %80 = arith.addf %79, %78 : vector<8x4xf32>
    %81 = tpu.reciprocal %80 {approx = true} : vector<8x4xf32> -> vector<8x4xf32>
    %cst_28 = arith.constant 0.000000e+00 : f32
    %82 = vector.broadcast %cst_28 : f32 to vector<8x104xf32>
    %83 = tpu.concatenate %39, %58, %75, %81, %82 in 1 : vector<8x8xf32>, vector<8x8xf32>, vector<8x4xf32>, vector<8x4xf32>, vector<8x104xf32> -> vector<8x128xf32>
    %c0_29 = arith.constant 0 : index
    %c0_30 = arith.constant 0 : index
    %84 = vector.load %arg6[%c0_29, %c0_30] : memref<8x128xf32, #tpu.memory_space<vmem>>, vector<8x128xf32>
    tpu.vector_store %arg6[%c0_29, %c0_30], %83 {strides = array<i32>} : memref<8x128xf32, #tpu.memory_space<vmem>>, vector<8x128xf32>,
    return
  }
}

</mosaic_0001>

<llo_original>
// kernel: tpu_custom_call.1
$region0: #{tpu_custom_call.1}
  #allocation0 [shape = 'u32[]', space=smem, size = 0x4, offset = 0x4, fixed_abs, tag = 'smem constant byte address 0x4 - core index']
  #allocation1 [shape = 'u32[72,128]{1,0:T(1,128)}', space=vmem, size = 0x9000, scoped, tag = 'internal scratch']
  %s0 = inlined_call_operand.hbm [shape: bf16[8,768], index: 0, kind: input, shape index: {}]
  %s1 = inlined_call_operand.hbm [shape: bf16[768,128], index: 1, kind: input, shape index: {}]
  %s2 = inlined_call_operand.hbm [shape: bf16[32,64], index: 2, kind: input, shape index: {}]
  %s3 = inlined_call_operand.hbm [shape: bf16[64,128], index: 3, kind: input, shape index: {}]
  %s4 = inlined_call_operand.hbm [shape: bf16[128,128], index: 4, kind: input, shape index: {}]
  %s5 = inlined_call_operand.hbm [shape: f32[8,128], index: 5, kind: input, shape index: {}]
  %s6 = inlined_call_operand.hbm [shape: f32[8,128], index: 6, kind: output, shape index: {}]
  %s7 = sld [smem:[#allocation0]]
  $region58: #{tpu_custom_call.1} parent=0
    _
  %s9 = ssub.s32 1, %s7
  %s10 = scalar_select 0, %s9, %s7
  $region1: #{tpu_custom_call.1} parent=0
    #allocation2 [shape = 'u8[12288]{0}', space=vmem, size = 0x3000, scoped, tag = 'input window, operand 0, single buffered']
    #allocation3 [shape = 's32[1]{0}', space=sflag, size = 0x4, scoped, tag = 'scoped memory for tpu_custom_call.1']
    #allocation4 [shape = 's32[1]{0}', space=sflag, size = 0x4, scoped, tag = 'scoped memory for tpu_custom_call.1']
    #allocation5 [shape = 'u8[196608]{0}', space=vmem, size = 0x30000, scoped, tag = 'input window, operand 1, single buffered']
    #allocation6 [shape = 's32[1]{0}', space=sflag, size = 0x4, scoped, tag = 'scoped memory for tpu_custom_call.1']
    #allocation7 [shape = 'u8[8192]{0}', space=vmem, size = 0x2000, scoped, tag = 'input window, operand 2, single buffered']
    #allocation8 [shape = 'u8[16384]{0}', space=vmem, size = 0x4000, scoped, tag = 'input window, operand 3, single buffered']
    #allocation9 [shape = 's32[1]{0}', space=sflag, size = 0x4, scoped, tag = 'scoped memory for tpu_custom_call.1']
    #allocation10 [shape = 'u8[32768]{0}', space=vmem, size = 0x8000, scoped, tag = 'input window, operand 4, single buffered']
    #allocation11 [shape = 'u8[4096]{0}', space=vmem, size = 0x1000, scoped, tag = 'input window, operand 5, single buffered']
    #allocation12 [shape = 's32[1]{0}', space=sflag, size = 0x4, scoped, tag = 'scoped memory for tpu_custom_call.1']
    #allocation13 [shape = 'u8[4096]{0}', space=vmem, size = 0x1000, scoped, tag = 'output window, operand 0, single buffered']
    %11 = vsyncpa [#allocation3], 0
    %12 = vsyncpa [#allocation6], 0
    %13 = vsyncpa [#allocation9], 0
    %14 = vsyncpa [#allocation12], 0
    %15 = vsyncpa [#allocation4], 0
    // Predicated region
    $region2: #{tpu_custom_call.1} parent=1 // pred_check
      _
    $region3: #{tpu_custom_call.1} parent=1 // pred_check_branch
      %17 = sbr.rel (0) target = $region5
    $region4: #{tpu_custom_call.1} parent=1 // pred_region
      %19 = vsyncadd [#allocation3], 0
      %s21 = sshll.u32 %s0, 4
      %s22 = int_to_ptr.hbm [resolvable:$true] %s21
      %s23 = sshll.u32 [#allocation2], 4
      %s24 = int_to_ptr.vmem [resolvable:$true] %s23
      %26 = dma.hbm_to_vmem [thread:$0]  %s22, 384, %s24, [#allocation3]
    $region5: #{tpu_custom_call.1} parent=1 // pred_fallthru
      _
    // Predicated region
    $region6: #{tpu_custom_call.1} parent=1 // pred_check
      _
    $region7: #{tpu_custom_call.1} parent=1 // pred_check_branch
      %28 = sbr.rel (0) target = $region9
    $region8: #{tpu_custom_call.1} parent=1 // pred_region
      %30 = vsyncadd [#allocation6], 0
      %s31 = sshll.u32 %s1, 4
      %s32 = int_to_ptr.hbm [resolvable:$true] %s31
      %s33 = sshll.u32 [#allocation5], 4
      %s34 = int_to_ptr.vmem [resolvable:$true] %s33
      %39 = dma.hbm_to_vmem [thread:$0]  %s32, 6144, %s34, [#allocation6], 64, 64, 4
    $region9: #{tpu_custom_call.1} parent=1 // pred_fallthru
      _
    // Predicated region
    $region10: #{tpu_custom_call.1} parent=1 // pred_check
      _
    $region11: #{tpu_custom_call.1} parent=1 // pred_check_branch
      %41 = sbr.rel (0) target = $region13
    $region12: #{tpu_custom_call.1} parent=1 // pred_region
      %43 = vsyncadd [#allocation6], 0
      %s44 = sshll.u32 %s2, 4
      %s45 = int_to_ptr.hbm [resolvable:$true] %s44
      %s46 = sshll.u32 [#allocation7], 4
      %s47 = int_to_ptr.vmem [resolvable:$true] %s46
      %52 = dma.hbm_to_vmem [thread:$0]  %s45, 256, %s47, [#allocation6], 64, 64, 4
    $region13: #{tpu_custom_call.1} parent=1 // pred_fallthru
      _
    // Predicated region
    $region14: #{tpu_custom_call.1} parent=1 // pred_check
      _
    $region15: #{tpu_custom_call.1} parent=1 // pred_check_branch
      %54 = sbr.rel (0) target = $region17
    $region16: #{tpu_custom_call.1} parent=1 // pred_region
      %56 = vsyncadd [#allocation9], 0
      %s57 = sshll.u32 %s3, 4
      %s58 = int_to_ptr.hbm [resolvable:$true] %s57
      %s59 = sshll.u32 [#allocation8], 4
      %s60 = int_to_ptr.vmem [resolvable:$true] %s59
      %65 = dma.hbm_to_vmem [thread:$0]  %s58, 512, %s60, [#allocation9], 64, 64, 4
    $region17: #{tpu_custom_call.1} parent=1 // pred_fallthru
      _
    // Predicated region
    $region18: #{tpu_custom_call.1} parent=1 // pred_check
      _
    $region19: #{tpu_custom_call.1} parent=1 // pred_check_branch
      %67 = sbr.rel (0) target = $region21
    $region20: #{tpu_custom_call.1} parent=1 // pred_region
      %69 = vsyncadd [#allocation9], 0
      %s70 = sshll.u32 %s4, 4
      %s71 = int_to_ptr.hbm [resolvable:$true] %s70
      %s72 = sshll.u32 [#allocation10], 4
      %s73 = int_to_ptr.vmem [resolvable:$true] %s72
      %78 = dma.hbm_to_vmem [thread:$0]  %s71, 1024, %s73, [#allocation9], 64, 64, 4
    $region21: #{tpu_custom_call.1} parent=1 // pred_fallthru
      _
    // Predicated region
    $region22: #{tpu_custom_call.1} parent=1 // pred_check
      _
    $region23: #{tpu_custom_call.1} parent=1 // pred_check_branch
      %80 = sbr.rel (0) target = $region25
    $region24: #{tpu_custom_call.1} parent=1 // pred_region
      %82 = vsyncadd [#allocation12], 0
      %s84 = sshll.u32 %s5, 4
      %s85 = int_to_ptr.hbm [resolvable:$true] %s84
      %s86 = sshll.u32 [#allocation11], 4
      %s87 = int_to_ptr.vmem [resolvable:$true] %s86
      %89 = dma.hbm_to_vmem [thread:$0]  %s85, 128, %s87, [#allocation12]
    $region25: #{tpu_custom_call.1} parent=1 // pred_fallthru
      _
    // Predicated region
    $region26: #{tpu_custom_call.1} parent=1 // pred_check
      _
    $region27: #{tpu_custom_call.1} parent=1 // pred_check_branch
      %91 = sbr.rel (0) target = $region29
    $region28: #{tpu_custom_call.1} parent=1 // pred_region
      %93 = dma.done [#allocation3], 384
    $region29: #{tpu_custom_call.1} parent=1 // pred_fallthru
      _
    // Predicated region
    $region30: #{tpu_custom_call.1} parent=1 // pred_check
      _
    $region31: #{tpu_custom_call.1} parent=1 // pred_check_branch
      %95 = sbr.rel (0) target = $region33
    $region32: #{tpu_custom_call.1} parent=1 // pred_region
      %97 = dma.done [#allocation6], 6144
    $region33: #{tpu_custom_call.1} parent=1 // pred_fallthru
      _
    // Predicated region
    $region34: #{tpu_custom_call.1} parent=1 // pred_check
      _
    $region35: #{tpu_custom_call.1} parent=1 // pred_check_branch
      %99 = sbr.rel (0) target = $region37
    $region36: #{tpu_custom_call.1} parent=1 // pred_region
      %101 = dma.done [#allocation6], 256
    $region37: #{tpu_custom_call.1} parent=1 // pred_fallthru
      _
    // Predicated region
    $region38: #{tpu_custom_call.1} parent=1 // pred_check
      _
    $region39: #{tpu_custom_call.1} parent=1 // pred_check_branch
      %103 = sbr.rel (0) target = $region41
    $region40: #{tpu_custom_call.1} parent=1 // pred_region
      %105 = dma.done [#allocation9], 512
    $region41: #{tpu_custom_call.1} parent=1 // pred_fallthru
      _
    // Predicated region
    $region42: #{tpu_custom_call.1} parent=1 // pred_check
      _
    $region43: #{tpu_custom_call.1} parent=1 // pred_check_branch
      %107 = sbr.rel (0) target = $region45
    $region44: #{tpu_custom_call.1} parent=1 // pred_region
      %109 = dma.done [#allocation9], 1024
    $region45: #{tpu_custom_call.1} parent=1 // pred_fallthru
      _
    // Predicated region
    $region46: #{tpu_custom_call.1} parent=1 // pred_check
      _
    $region47: #{tpu_custom_call.1} parent=1 // pred_check_branch
      %111 = sbr.rel (0) target = $region49
    $region48: #{tpu_custom_call.1} parent=1 // pred_region
      %113 = dma.done [#allocation12], 128
    $region49: #{tpu_custom_call.1} parent=1 // pred_fallthru
      _
    %v115 = vld [vmem:[#allocation2] sm:$0xff]
    %v116 = vld [vmem:[#allocation2 + $0x8] sm:$0xff]
    %v117 = vld [vmem:[#allocation2 + $0x10] sm:$0xff]
    %v118 = vld [vmem:[#allocation5] sm:$0xf]
    %v119 = vld [vmem:[#allocation5 + $0x4] sm:$0xf]
    %v120 = vld [vmem:[#allocation5 + $0x8] sm:$0xf]
    %v121 = vld [vmem:[#allocation5 + $0xc] sm:$0xf]
    %v122 = vld [vmem:[#allocation5 + $0x10] sm:$0xf]
    %v123 = vld [vmem:[#allocation5 + $0x14] sm:$0xf]
    %v124 = vld [vmem:[#allocation5 + $0x18] sm:$0xf]
    %v125 = vld [vmem:[#allocation5 + $0x1c] sm:$0xf]
    %v126 = vld [vmem:[#allocation5 + $0x20] sm:$0xf]
    %v127 = vld [vmem:[#allocation5 + $0x24] sm:$0xf]
    %v128 = vld [vmem:[#allocation5 + $0x28] sm:$0xf]
    %v129 = vld [vmem:[#allocation5 + $0x2c] sm:$0xf]
    %v130 = vld [vmem:[#allocation5 + $0x30] sm:$0xf]
    %v131 = vld [vmem:[#allocation5 + $0x34] sm:$0xf]
    %v132 = vld [vmem:[#allocation5 + $0x38] sm:$0xf]
    %v133 = vld [vmem:[#allocation5 + $0x3c] sm:$0xf]
    %v134 = vld [vmem:[#allocation5 + $0x40] sm:$0xf]
    %v135 = vld [vmem:[#allocation5 + $0x44] sm:$0xf]
    %v136 = vld [vmem:[#allocation5 + $0x48] sm:$0xf]
    %v137 = vld [vmem:[#allocation5 + $0x4c] sm:$0xf]
    %v138 = vld [vmem:[#allocation5 + $0x50] sm:$0xf]
    %v139 = vld [vmem:[#allocation5 + $0x54] sm:$0xf]
    %v140 = vld [vmem:[#allocation5 + $0x58] sm:$0xf]
    %v141 = vld [vmem:[#allocation5 + $0x5c] sm:$0xf]
    %v142 = vld [vmem:[#allocation5 + $0x60] sm:$0xf]
    %v143 = vld [vmem:[#allocation5 + $0x64] sm:$0xf]
    %v144 = vld [vmem:[#allocation5 + $0x68] sm:$0xf]
    %v145 = vld [vmem:[#allocation5 + $0x6c] sm:$0xf]
    %v146 = vld [vmem:[#allocation5 + $0x70] sm:$0xf]
    %v147 = vld [vmem:[#allocation5 + $0x74] sm:$0xf]
    %v148 = vld [vmem:[#allocation5 + $0x78] sm:$0xf]
    %v149 = vld [vmem:[#allocation5 + $0x7c] sm:$0xf]
    %v150 = vld [vmem:[#allocation5 + $0x80] sm:$0xf]
    %v151 = vld [vmem:[#allocation5 + $0x84] sm:$0xf]
    %v152 = vld [vmem:[#allocation5 + $0x88] sm:$0xf]
    %v153 = vld [vmem:[#allocation5 + $0x8c] sm:$0xf]
    %v154 = vld [vmem:[#allocation5 + $0x90] sm:$0xf]
    %v155 = vld [vmem:[#allocation5 + $0x94] sm:$0xf]
    %v156 = vld [vmem:[#allocation5 + $0x98] sm:$0xf]
    %v157 = vld [vmem:[#allocation5 + $0x9c] sm:$0xf]
    %v158 = vld [vmem:[#allocation5 + $0xa0] sm:$0xf]
    %v159 = vld [vmem:[#allocation5 + $0xa4] sm:$0xf]
    %v160 = vld [vmem:[#allocation5 + $0xa8] sm:$0xf]
    %v161 = vld [vmem:[#allocation5 + $0xac] sm:$0xf]
    %v162 = vld [vmem:[#allocation5 + $0xb0] sm:$0xf]
    %v163 = vld [vmem:[#allocation5 + $0xb4] sm:$0xf]
    %v164 = vld [vmem:[#allocation5 + $0xb8] sm:$0xf]
    %v165 = vld [vmem:[#allocation5 + $0xbc] sm:$0xf]
    %v166 = vld [vmem:[#allocation5 + $0xc0] sm:$0xf]
    %v167 = vld [vmem:[#allocation5 + $0xc4] sm:$0xf]
    %v168 = vld [vmem:[#allocation5 + $0xc8] sm:$0xf]
    %v169 = vld [vmem:[#allocation5 + $0xcc] sm:$0xf]
    %v170 = vld [vmem:[#allocation5 + $0xd0] sm:$0xf]
    %v171 = vld [vmem:[#allocation5 + $0xd4] sm:$0xf]
    %v172 = vld [vmem:[#allocation5 + $0xd8] sm:$0xf]
    %v173 = vld [vmem:[#allocation5 + $0xdc] sm:$0xf]
    %v174 = vld [vmem:[#allocation5 + $0xe0] sm:$0xf]
    %v175 = vld [vmem:[#allocation5 + $0xe4] sm:$0xf]
    %v176 = vld [vmem:[#allocation5 + $0xe8] sm:$0xf]
    %v177 = vld [vmem:[#allocation5 + $0xec] sm:$0xf]
    %v178 = vld [vmem:[#allocation5 + $0xf0] sm:$0xf]
    %v179 = vld [vmem:[#allocation5 + $0xf4] sm:$0xf]
    %v180 = vld [vmem:[#allocation5 + $0xf8] sm:$0xf]
    %v181 = vld [vmem:[#allocation5 + $0xfc] sm:$0xf]
    %v182 = vld [vmem:[#allocation5 + $0x100] sm:$0xf]
    %v183 = vld [vmem:[#allocation5 + $0x104] sm:$0xf]
    %v184 = vld [vmem:[#allocation5 + $0x108] sm:$0xf]
    %v185 = vld [vmem:[#allocation5 + $0x10c] sm:$0xf]
    %v186 = vld [vmem:[#allocation5 + $0x110] sm:$0xf]
    %v187 = vld [vmem:[#allocation5 + $0x114] sm:$0xf]
    %v188 = vld [vmem:[#allocation5 + $0x118] sm:$0xf]
    %v189 = vld [vmem:[#allocation5 + $0x11c] sm:$0xf]
    %v190 = vld [vmem:[#allocation5 + $0x120] sm:$0xf]
    %v191 = vld [vmem:[#allocation5 + $0x124] sm:$0xf]
    %v192 = vld [vmem:[#allocation5 + $0x128] sm:$0xf]
    %v193 = vld [vmem:[#allocation5 + $0x12c] sm:$0xf]
    %v194 = vld [vmem:[#allocation5 + $0x130] sm:$0xf]
    %v195 = vld [vmem:[#allocation5 + $0x134] sm:$0xf]
    %v196 = vld [vmem:[#allocation5 + $0x138] sm:$0xf]
    %v197 = vld [vmem:[#allocation5 + $0x13c] sm:$0xf]
    %v198 = vld [vmem:[#allocation5 + $0x140] sm:$0xf]
    %v199 = vld [vmem:[#allocation5 + $0x144] sm:$0xf]
    %v200 = vld [vmem:[#allocation5 + $0x148] sm:$0xf]
    %v201 = vld [vmem:[#allocation5 + $0x14c] sm:$0xf]
    %v202 = vld [vmem:[#allocation5 + $0x150] sm:$0xf]
    %v203 = vld [vmem:[#allocation5 + $0x154] sm:$0xf]
    %v204 = vld [vmem:[#allocation5 + $0x158] sm:$0xf]
    %v205 = vld [vmem:[#allocation5 + $0x15c] sm:$0xf]
    %v206 = vld [vmem:[#allocation5 + $0x160] sm:$0xf]
    %v207 = vld [vmem:[#allocation5 + $0x164] sm:$0xf]
    %v208 = vld [vmem:[#allocation5 + $0x168] sm:$0xf]
    %v209 = vld [vmem:[#allocation5 + $0x16c] sm:$0xf]
    %v210 = vld [vmem:[#allocation5 + $0x170] sm:$0xf]
    %v211 = vld [vmem:[#allocation5 + $0x174] sm:$0xf]
    %v212 = vld [vmem:[#allocation5 + $0x178] sm:$0xf]
    %v213 = vld [vmem:[#allocation5 + $0x17c] sm:$0xf]
    %v217 = vunpack.c.l.b16 %v115
    %v218 = vunpack.c.h.b16 %v115
    %v219 = vunpack.c.l.b16 %v116
    %v220 = vunpack.c.h.b16 %v116
    %v221 = vunpack.c.l.b16 %v117
    %v222 = vunpack.c.h.b16 %v117
    %v223 = vpack.c.b16 %v217, %v217
    %v224 = vpack.c.b16 %v218, %v218
    %v225 = vpack.c.b16 %v219, %v219
    %v226 = vpack.c.b16 %v220, %v220
    %v227 = vpack.c.b16 %v221, %v221
    %v228 = vpack.c.b16 %v222, %v222
    %v331 = vunpack.c.l.b16 %v118
    %v332 = vunpack.c.l.b16 %v119
    %v333 = vunpack.c.l.b16 %v120
    %v334 = vunpack.c.l.b16 %v121
    %v335 = vunpack.c.l.b16 %v122
    %v336 = vunpack.c.l.b16 %v123
    %v337 = vunpack.c.l.b16 %v124
    %v338 = vunpack.c.l.b16 %v125
    %v339 = vunpack.c.l.b16 %v126
    %v340 = vunpack.c.l.b16 %v127
    %v341 = vunpack.c.l.b16 %v128
    %v342 = vunpack.c.l.b16 %v129
    %v343 = vunpack.c.l.b16 %v130
    %v344 = vunpack.c.l.b16 %v131
    %v345 = vunpack.c.l.b16 %v132
    %v346 = vunpack.c.l.b16 %v133
    %v347 = vunpack.c.l.b16 %v134
    %v348 = vunpack.c.l.b16 %v135
    %v349 = vunpack.c.l.b16 %v136
    %v350 = vunpack.c.l.b16 %v137
    %v351 = vunpack.c.l.b16 %v138
    %v352 = vunpack.c.l.b16 %v139
    %v353 = vunpack.c.l.b16 %v140
    %v354 = vunpack.c.l.b16 %v141
    %v355 = vunpack.c.l.b16 %v142
    %v356 = vunpack.c.l.b16 %v143
    %v357 = vunpack.c.l.b16 %v144
    %v358 = vunpack.c.l.b16 %v145
    %v359 = vunpack.c.l.b16 %v146
    %v360 = vunpack.c.l.b16 %v147
    %v361 = vunpack.c.l.b16 %v148
    %v362 = vunpack.c.l.b16 %v149
    %v363 = vunpack.c.l.b16 %v150
    %v364 = vunpack.c.l.b16 %v151
    %v365 = vunpack.c.l.b16 %v152
    %v366 = vunpack.c.l.b16 %v153
    %v367 = vunpack.c.l.b16 %v154
    %v368 = vunpack.c.l.b16 %v155
    %v369 = vunpack.c.l.b16 %v156
    %v370 = vunpack.c.l.b16 %v157
    %v371 = vunpack.c.l.b16 %v158
    %v372 = vunpack.c.l.b16 %v159
    %v373 = vunpack.c.l.b16 %v160
    %v374 = vunpack.c.l.b16 %v161
    %v375 = vunpack.c.l.b16 %v162
    %v376 = vunpack.c.l.b16 %v163
    %v377 = vunpack.c.l.b16 %v164
    %v378 = vunpack.c.l.b16 %v165
    %v379 = vunpack.c.l.b16 %v166
    %v380 = vunpack.c.l.b16 %v167
    %v381 = vunpack.c.l.b16 %v168
    %v382 = vunpack.c.l.b16 %v169
    %v383 = vunpack.c.l.b16 %v170
    %v384 = vunpack.c.l.b16 %v171
    %v385 = vunpack.c.l.b16 %v172
    %v386 = vunpack.c.l.b16 %v173
    %v387 = vunpack.c.l.b16 %v174
    %v388 = vunpack.c.l.b16 %v175
    %v389 = vunpack.c.l.b16 %v176
    %v390 = vunpack.c.l.b16 %v177
    %v391 = vunpack.c.l.b16 %v178
    %v392 = vunpack.c.l.b16 %v179
    %v393 = vunpack.c.l.b16 %v180
    %v394 = vunpack.c.l.b16 %v181
    %v395 = vunpack.c.l.b16 %v182
    %v396 = vunpack.c.l.b16 %v183
    %v397 = vunpack.c.l.b16 %v184
    %v398 = vunpack.c.l.b16 %v185
    %v399 = vunpack.c.l.b16 %v186
    %v400 = vunpack.c.l.b16 %v187
    %v401 = vunpack.c.l.b16 %v188
    %v402 = vunpack.c.l.b16 %v189
    %v403 = vunpack.c.l.b16 %v190
    %v404 = vunpack.c.l.b16 %v191
    %v405 = vunpack.c.l.b16 %v192
    %v406 = vunpack.c.l.b16 %v193
    %v407 = vunpack.c.l.b16 %v194
    %v408 = vunpack.c.l.b16 %v195
    %v409 = vunpack.c.l.b16 %v196
    %v410 = vunpack.c.l.b16 %v197
    %v411 = vunpack.c.l.b16 %v198
    %v412 = vunpack.c.l.b16 %v199
    %v413 = vunpack.c.l.b16 %v200
    %v414 = vunpack.c.l.b16 %v201
    %v415 = vunpack.c.l.b16 %v202
    %v416 = vunpack.c.l.b16 %v203
    %v417 = vunpack.c.l.b16 %v204
    %v418 = vunpack.c.l.b16 %v205
    %v419 = vunpack.c.l.b16 %v206
    %v420 = vunpack.c.l.b16 %v207
    %v421 = vunpack.c.l.b16 %v208
    %v422 = vunpack.c.l.b16 %v209
    %v423 = vunpack.c.l.b16 %v210
    %v424 = vunpack.c.l.b16 %v211
    %v425 = vunpack.c.l.b16 %v212
    %v426 = vunpack.c.l.b16 %v213
    %v427 = vpack.c.b16 %v332, %v331
    %v428 = vpack.c.b16 %v334, %v333
    %v429 = vpack.c.b16 %v336, %v335
    %v430 = vpack.c.b16 %v338, %v337
    %v431 = vpack.c.b16 %v340, %v339
    %v432 = vpack.c.b16 %v342, %v341
    %v433 = vpack.c.b16 %v344, %v343
    %v434 = vpack.c.b16 %v346, %v345
    %v435 = vpack.c.b16 %v348, %v347
    %v436 = vpack.c.b16 %v350, %v349
    %v437 = vpack.c.b16 %v352, %v351
    %v438 = vpack.c.b16 %v354, %v353
    %v439 = vpack.c.b16 %v356, %v355
    %v440 = vpack.c.b16 %v358, %v357
    %v441 = vpack.c.b16 %v360, %v359
    %v442 = vpack.c.b16 %v362, %v361
    %v443 = vpack.c.b16 %v364, %v363
    %v444 = vpack.c.b16 %v366, %v365
    %v445 = vpack.c.b16 %v368, %v367
    %v446 = vpack.c.b16 %v370, %v369
    %v447 = vpack.c.b16 %v372, %v371
    %v448 = vpack.c.b16 %v374, %v373
    %v449 = vpack.c.b16 %v376, %v375
    %v450 = vpack.c.b16 %v378, %v377
    %v451 = vpack.c.b16 %v380, %v379
    %v452 = vpack.c.b16 %v382, %v381
    %v453 = vpack.c.b16 %v384, %v383
    %v454 = vpack.c.b16 %v386, %v385
    %v455 = vpack.c.b16 %v388, %v387
    %v456 = vpack.c.b16 %v390, %v389
    %v457 = vpack.c.b16 %v392, %v391
    %v458 = vpack.c.b16 %v394, %v393
    %v459 = vpack.c.b16 %v396, %v395
    %v460 = vpack.c.b16 %v398, %v397
    %v461 = vpack.c.b16 %v400, %v399
    %v462 = vpack.c.b16 %v402, %v401
    %v463 = vpack.c.b16 %v404, %v403
    %v464 = vpack.c.b16 %v406, %v405
    %v465 = vpack.c.b16 %v408, %v407
    %v466 = vpack.c.b16 %v410, %v409
    %v467 = vpack.c.b16 %v412, %v411
    %v468 = vpack.c.b16 %v414, %v413
    %v469 = vpack.c.b16 %v416, %v415
    %v470 = vpack.c.b16 %v418, %v417
    %v471 = vpack.c.b16 %v420, %v419
    %v472 = vpack.c.b16 %v422, %v421
    %v473 = vpack.c.b16 %v424, %v423
    %v474 = vpack.c.b16 %v426, %v425
    %523 = vmatpush.bf16.msra.mxu0 %v434
    %524 = vmatpush.bf16.msra.mxu0 %v433
    %525 = vmatpush.bf16.msra.mxu0 %v432
    %526 = vmatpush.bf16.msra.mxu0 %v431
    %527 = vmatpush.bf16.msra.mxu0 %v430
    %528 = vmatpush.bf16.msra.mxu0 %v429
    %529 = vmatpush.bf16.msra.mxu0 %v428
    %530 = vmatpush.bf16.msra.mxu0 %v427
    %531 = vmatmul.bf16.gmra.mxu0 %v223
    %v532 = vpop.f32.mrf.mxu0
    %v533 = vadd.f32 0.0, %v532
    %v534 = vpop.f32.mrf.mxu0
    %535 = vdwg.mxu0
    %536 = vmatpush.bf16.msra.mxu0 %v442
    %537 = vmatpush.bf16.msra.mxu0 %v441
    %538 = vmatpush.bf16.msra.mxu0 %v440
    %539 = vmatpush.bf16.msra.mxu0 %v439
    %540 = vmatpush.bf16.msra.mxu0 %v438
    %541 = vmatpush.bf16.msra.mxu0 %v437
    %542 = vmatpush.bf16.msra.mxu0 %v436
    %543 = vmatpush.bf16.msra.mxu0 %v435
    %544 = vmatmul.bf16.gmra.mxu0 %v224
    %v545 = vpop.f32.mrf.mxu0
    %v546 = vadd.f32 %v533, %v545
    %v547 = vpop.f32.mrf.mxu0
    %548 = vdwg.mxu0
    %549 = vmatpush.bf16.msra.mxu0 %v450
    %550 = vmatpush.bf16.msra.mxu0 %v449
    %551 = vmatpush.bf16.msra.mxu0 %v448
    %552 = vmatpush.bf16.msra.mxu0 %v447
    %553 = vmatpush.bf16.msra.mxu0 %v446
    %554 = vmatpush.bf16.msra.mxu0 %v445
    %555 = vmatpush.bf16.msra.mxu0 %v444
    %556 = vmatpush.bf16.msra.mxu0 %v443
    %557 = vmatmul.bf16.gmra.mxu0 %v225
    %v558 = vpop.f32.mrf.mxu0
    %v559 = vadd.f32 %v546, %v558
    %v560 = vpop.f32.mrf.mxu0
    %561 = vdwg.mxu0
    %562 = vmatpush.bf16.msra.mxu0 %v458
    %563 = vmatpush.bf16.msra.mxu0 %v457
    %564 = vmatpush.bf16.msra.mxu0 %v456
    %565 = vmatpush.bf16.msra.mxu0 %v455
    %566 = vmatpush.bf16.msra.mxu0 %v454
    %567 = vmatpush.bf16.msra.mxu0 %v453
    %568 = vmatpush.bf16.msra.mxu0 %v452
    %569 = vmatpush.bf16.msra.mxu0 %v451
    %570 = vmatmul.bf16.gmra.mxu0 %v226
    %v571 = vpop.f32.mrf.mxu0
    %v572 = vadd.f32 %v559, %v571
    %v573 = vpop.f32.mrf.mxu0
    %574 = vdwg.mxu0
    %575 = vmatpush.bf16.msra.mxu0 %v466
    %576 = vmatpush.bf16.msra.mxu0 %v465
    %577 = vmatpush.bf16.msra.mxu0 %v464
    %578 = vmatpush.bf16.msra.mxu0 %v463
    %579 = vmatpush.bf16.msra.mxu0 %v462
    %580 = vmatpush.bf16.msra.mxu0 %v461
    %581 = vmatpush.bf16.msra.mxu0 %v460
    %582 = vmatpush.bf16.msra.mxu0 %v459
    %583 = vmatmul.bf16.gmra.mxu0 %v227
    %v584 = vpop.f32.mrf.mxu0
    %v585 = vadd.f32 %v572, %v584
    %v586 = vpop.f32.mrf.mxu0
    %587 = vdwg.mxu0
    %588 = vmatpush.bf16.msra.mxu0 %v474
    %589 = vmatpush.bf16.msra.mxu0 %v473
    %590 = vmatpush.bf16.msra.mxu0 %v472
    %591 = vmatpush.bf16.msra.mxu0 %v471
    %592 = vmatpush.bf16.msra.mxu0 %v470
    %593 = vmatpush.bf16.msra.mxu0 %v469
    %594 = vmatpush.bf16.msra.mxu0 %v468
    %595 = vmatpush.bf16.msra.mxu0 %v467
    %596 = vmatmul.bf16.gmra.mxu0 %v228
    %v597 = vpop.f32.mrf.mxu0
    %v598 = vadd.f32 %v585, %v597
    %v599 = vpop.f32.mrf.mxu0
    %600 = vdwg.mxu0
    %v601 = vld [vmem:[#allocation7] sm:$0xf]
    %v602 = vld [vmem:[#allocation7 + $0x4] sm:$0xf]
    %v603 = vld [vmem:[#allocation7 + $0x8] sm:$0xf]
    %v604 = vld [vmem:[#allocation7 + $0xc] sm:$0xf]
    %v605 = vld [vmem:[#allocation8] sm:$0xf]
    %v606 = vld [vmem:[#allocation8 + $0x4] sm:$0xf]
    %v607 = vld [vmem:[#allocation8 + $0x8] sm:$0xf]
    %v608 = vld [vmem:[#allocation8 + $0xc] sm:$0xf]
    %v609 = vld [vmem:[#allocation8 + $0x10] sm:$0xf]
    %v610 = vld [vmem:[#allocation8 + $0x14] sm:$0xf]
    %v611 = vld [vmem:[#allocation8 + $0x18] sm:$0xf]
    %v612 = vld [vmem:[#allocation8 + $0x1c] sm:$0xf]
    %v617 = vunpack.c.l.b16 %v601
    %v618 = vunpack.c.l.b16 %v602
    %v619 = vunpack.c.l.b16 %v603
    %v620 = vunpack.c.l.b16 %v604
    %v621 = vpack.c.b16 %v618, %v617
    %v622 = vpack.c.b16 %v620, %v619
    %v631 = vunpack.c.l.b16 %v605
    %v632 = vunpack.c.l.b16 %v606
    %v633 = vunpack.c.l.b16 %v607
    %v634 = vunpack.c.l.b16 %v608
    %v635 = vunpack.c.l.b16 %v609
    %v636 = vunpack.c.l.b16 %v610
    %v637 = vunpack.c.l.b16 %v611
    %v638 = vunpack.c.l.b16 %v612
    %v639 = vpack.c.b16 %v632, %v631
    %v640 = vpack.c.b16 %v634, %v633
    %v641 = vpack.c.b16 %v636, %v635
    %v642 = vpack.c.b16 %v638, %v637
    %vm647 = vcmask 523264
    %v649 = vsel %vm647, %v621, 0
    %v652 = vsel %vm647, %v622, 0
    %654 = vmatpush.bf16.msra.mxu0 0
    %655 = vmatpush.bf16.msra.mxu0 0
    %656 = vmatpush.bf16.msra.mxu0 0
    %657 = vmatpush.bf16.msra.mxu0 0
    %658 = vmatpush.bf16.msra.mxu0 %v642
    %659 = vmatpush.bf16.msra.mxu0 %v641
    %660 = vmatpush.bf16.msra.mxu0 %v640
    %661 = vmatpush.bf16.msra.mxu0 %v639
    %662 = vmatmul.bf16.gmra.mxu0 %v649
    %v663 = vpop.f32.mrf.mxu0
    %v664 = vadd.f32 0.0, %v663
    %v665 = vpop.f32.mrf.mxu0
    %v666 = vadd.f32 0.0, %v665
    %667 = vmatmul.bf16.gmra.mxu0 %v652
    %v668 = vpop.f32.mrf.mxu0
    %v669 = vadd.f32 0.0, %v668
    %v670 = vpop.f32.mrf.mxu0
    %v671 = vadd.f32 0.0, %v670
    %672 = vdwg.mxu0
    %v673 = vpack.c.bf16 %v666, %v664
    %v674 = vpack.c.bf16 %v671, %v669
    %v675 = vld [vmem:[#allocation10] sm:$0xf]
    %v676 = vld [vmem:[#allocation10 + $0x4] sm:$0xf]
    %v677 = vld [vmem:[#allocation10 + $0x8] sm:$0xf]
    %v678 = vld [vmem:[#allocation10 + $0xc] sm:$0xf]
    %v679 = vld [vmem:[#allocation10 + $0x10] sm:$0xf]
    %v680 = vld [vmem:[#allocation10 + $0x14] sm:$0xf]
    %v681 = vld [vmem:[#allocation10 + $0x18] sm:$0xf]
    %v682 = vld [vmem:[#allocation10 + $0x1c] sm:$0xf]
    %v683 = vld [vmem:[#allocation10 + $0x20] sm:$0xf]
    %v684 = vld [vmem:[#allocation10 + $0x24] sm:$0xf]
    %v685 = vld [vmem:[#allocation10 + $0x28] sm:$0xf]
    %v686 = vld [vmem:[#allocation10 + $0x2c] sm:$0xf]
    %v687 = vld [vmem:[#allocation10 + $0x30] sm:$0xf]
    %v688 = vld [vmem:[#allocation10 + $0x34] sm:$0xf]
    %v689 = vld [vmem:[#allocation10 + $0x38] sm:$0xf]
    %v690 = vld [vmem:[#allocation10 + $0x3c] sm:$0xf]
    %v707 = vunpack.c.l.b16 %v675
    %v708 = vunpack.c.l.b16 %v676
    %v709 = vunpack.c.l.b16 %v677
    %v710 = vunpack.c.l.b16 %v678
    %v711 = vunpack.c.l.b16 %v679
    %v712 = vunpack.c.l.b16 %v680
    %v713 = vunpack.c.l.b16 %v681
    %v714 = vunpack.c.l.b16 %v682
    %v715 = vunpack.c.l.b16 %v683
    %v716 = vunpack.c.l.b16 %v684
    %v717 = vunpack.c.l.b16 %v685
    %v718 = vunpack.c.l.b16 %v686
    %v719 = vunpack.c.l.b16 %v687
    %v720 = vunpack.c.l.b16 %v688
    %v721 = vunpack.c.l.b16 %v689
    %v722 = vunpack.c.l.b16 %v690
    %v723 = vpack.c.b16 %v708, %v707
    %v724 = vpack.c.b16 %v710, %v709
    %v725 = vpack.c.b16 %v712, %v711
    %v726 = vpack.c.b16 %v714, %v713
    %v727 = vpack.c.b16 %v716, %v715
    %v728 = vpack.c.b16 %v718, %v717
    %v729 = vpack.c.b16 %v720, %v719
    %v730 = vpack.c.b16 %v722, %v721
    %739 = vmatpush.bf16.msra.mxu0 %v730
    %740 = vmatpush.bf16.msra.mxu0 %v729
    %741 = vmatpush.bf16.msra.mxu0 %v728
    %742 = vmatpush.bf16.msra.mxu0 %v727
    %743 = vmatpush.bf16.msra.mxu0 %v726
    %744 = vmatpush.bf16.msra.mxu0 %v725
    %745 = vmatpush.bf16.msra.mxu0 %v724
    %746 = vmatpush.bf16.msra.mxu0 %v723
    %747 = vmatmul.bf16.gmra.mxu0 %v673
    %v748 = vpop.f32.mrf.mxu0
    %v749 = vadd.f32 0.0, %v748
    %v750 = vpop.f32.mrf.mxu0
    %v751 = vadd.f32 0.0, %v750
    %752 = vmatmul.bf16.gmra.mxu0 %v674
    %v753 = vpop.f32.mrf.mxu0
    %v754 = vadd.f32 0.0, %v753
    %v755 = vpop.f32.mrf.mxu0
    %756 = vdwg.mxu0
    %v757 = vmul.f32 %v598, %v598
    %758 = vadd.xlane.f32.xlu0 %v757
    %v759 = vpop.xlane.xlu0 %758
    %v760 = vadd.f32 %v759, 1e-12
    %v761 = vrsqrt.pop %v760
    %v762 = vmul.f32 %v761, %v760
    %v763 = vmul.f32 %v762, %v761
    %v764 = vmul.f32 0.5, %v763
    %v765 = vsub.f32 1.5, %v764
    %v766 = vmul.f32 %v761, %v765
    %vm767 = vweird.f32 %v760
    %vm768 = vweird.f32 %v761
    %vm769 = vmor %vm767, %vm768
    %v770 = vsel %vm769, %v761, %v766
    %v771 = vmul.f32 %v598, %v770
    %v772 = vmul.f32 %v749, %v749
    %773 = vadd.xlane.f32.xlu0 %v772
    %v774 = vpop.xlane.xlu0 %773
    %v775 = vadd.f32 %v774, 1e-12
    %v776 = vrsqrt.pop %v775
    %v777 = vmul.f32 %v776, %v775
    %v778 = vmul.f32 %v777, %v776
    %v779 = vmul.f32 0.5, %v778
    %v780 = vsub.f32 1.5, %v779
    %v781 = vmul.f32 %v776, %v780
    %vm782 = vweird.f32 %v775
    %vm783 = vweird.f32 %v776
    %vm784 = vmor %vm782, %vm783
    %v785 = vsel %vm784, %v776, %v781
    %v786 = vmul.f32 %v749, %v785
    %v787 = vmul.f32 %v751, %v751
    %v788 = vmul.f32 %v754, %v754
    %789 = vadd.xlane.f32.xlu0 %v787
    %v790 = vpop.xlane.xlu0 %789
    %791 = vadd.xlane.f32.xlu0 %v788
    %v792 = vpop.xlane.xlu0 %791
    %v793 = vadd.f32 %v790, 1e-12
    %v794 = vadd.f32 %v792, 1e-12
    %v795 = vrsqrt.pop %v793
    %v796 = vmul.f32 %v795, %v793
    %v797 = vmul.f32 %v796, %v795
    %v798 = vmul.f32 0.5, %v797
    %v799 = vsub.f32 1.5, %v798
    %v800 = vmul.f32 %v795, %v799
    %vm801 = vweird.f32 %v793
    %vm802 = vweird.f32 %v795
    %vm803 = vmor %vm801, %vm802
    %v804 = vsel %vm803, %v795, %v800
    %v805 = vrsqrt.pop %v794
    %v806 = vmul.f32 %v805, %v794
    %v807 = vmul.f32 %v806, %v805
    %v808 = vmul.f32 0.5, %v807
    %v809 = vsub.f32 1.5, %v808
    %v810 = vmul.f32 %v805, %v809
    %vm811 = vweird.f32 %v794
    %vm812 = vweird.f32 %v805
    %vm813 = vmor %vm811, %vm812
    %v814 = vsel %vm813, %v805, %v810
    %v815 = vmul.f32 %v751, %v804
    %v816 = vmul.f32 %v754, %v814
    %817 = vmatpush.xpose.msra.mxu0 0.0
    %818 = vmatpush.xpose.msra.mxu0 0.0
    %819 = vmatpush.xpose.msra.mxu0 0.0
    %820 = vmatpush.xpose.msra.mxu0 0.0
    %821 = vmatpush.xpose.msra.mxu0 0.0
    %822 = vmatpush.xpose.msra.mxu0 0.0
    %823 = vmatpush.xpose.msra.mxu0 0.0
    %824 = vmatpush.xpose.msra.mxu0 0.0
    %825 = vmatpush.xpose.msra.mxu0 0.0
    %826 = vmatpush.xpose.msra.mxu0 0.0
    %827 = vmatpush.xpose.msra.mxu0 0.0
    %828 = vmatpush.xpose.msra.mxu0 0.0
    %829 = vmatpush.xpose.msra.mxu0 %v816
    %830 = vmatpush.xpose.msra.mxu0 %v815
    %831 = vmatpush.xpose.msra.mxu0 %v786
    %832 = vmatpush.xpose.msra.mxu0 %v771
    %833 = vmatmul.f32.gmra.mxu0 %v771
    %v834 = vpop.f32.mrf.mxu0
    %v835 = vadd.f32 0.0, %v834
    %836 = vmatmul.f32.gmra.mxu0 %v786
    %v837 = vpop.f32.mrf.mxu0
    %v838 = vadd.f32 0.0, %v837
    %839 = vdwg.mxu0
    %841 = vrot.lane.b32.xlu0 %v838, 120
    %v842 = vpop.permute.xlu0 %841
    %v844 = vadd.f32 %v835, %v842
    %v845 = vmul.f32 %v844, 0.5
    %v846 = vlaneseq
    %v847 = vand.u32 %v846, 127
    %vm848 = vcmp.lt.s32.totalorder %v847, 4
    %v849 = vsel %vm848, %v845, -1e+30
    %vm850 = vcmask 64512
    %v851 = vsel %vm850, %v849, -inf
    %852 = vmax.xlane.f32.xlu0 %v851
    %v853 = vpop.xlane.xlu0 %852
    %v854 = vsub.f32 %v849, %v853
    %v855 = vmul.f32 %v854, 1.442695
    %v856 = vpow.pop %v855
    %v857 = vsel %vm850, %v856, 0.0
    %858 = vadd.xlane.f32.xlu0 %v857
    %v859 = vpop.xlane.xlu0 %858
    %v860 = vrcp.pop %v859
    %v861 = vmul.f32 %v856, %v860
    %863 = vrot.lane.b32.xlu0 %v835, 124
    %v864 = vpop.permute.xlu0 %863
    %v866 = vmax.f32 %v835, %v864
    %v867 = vmin.f32 %v835, %v864
    %868 = vrot.lane.b32.xlu0 %v835, 120
    %v869 = vpop.permute.xlu0 %868
    %v871 = vmax.f32 %v866, %v869
    %v872 = vmin.f32 %v867, %v869
    %873 = vrot.lane.b32.xlu0 %v835, 116
    %v874 = vpop.permute.xlu0 %873
    %v876 = vmax.f32 %v871, %v874
    %v877 = vmin.f32 %v872, %v874
    %v878 = vsub.f32 0.0, %v877
    %v879 = vld [vmem:[#allocation11] sm:$0xff]
    %vm880 = vcmp.gt.f32.partialorder %v879, 0.5
    %882 = vrot.lane.b32.xlu0 %v876, 112
    %v883 = vpop.permute.xlu0 %882
    %886 = vrot.lane.b32.xlu0 %v878, 112
    %v887 = vpop.permute.xlu0 %886
    %v889 = vsel %vm880, %v883, %v887
    %v890 = vsub.f32 0.0, %v889
    %v891 = vmul.f32 %v890, 1.442695
    %v892 = vpow.pop %v891
    %v893 = vadd.f32 %v892, 1.0
    %v894 = vrcp.pop %v893
    %896 = vrot.lane.b32.xlu0 %v861, 8
    %v897 = vpop.permute.xlu0 %896
    %900 = vrot.lane.b32.xlu0 %v889, 16
    %v901 = vpop.permute.xlu0 %900
    %904 = vrot.lane.b32.xlu0 %v894, 20
    %v905 = vpop.permute.xlu0 %904
    %v907 = vsel %vm850, %v869, %v897
    %vm908 = vcmask 130048
    %v909 = vsel %vm908, %v907, %v901
    %vm910 = vcmask 162816
    %v911 = vsel %vm910, %v909, %v905
    %vm912 = vcmask 195584
    %v913 = vsel %vm912, %v911, 0.0
    %914 = vst [vmem:[#allocation13] sm:$0xff] %v913
    // Predicated region
    $region50: #{tpu_custom_call.1} parent=1 // pred_check
      _
    $region51: #{tpu_custom_call.1} parent=1 // pred_check_branch
      %916 = sbr.rel (0) target = $region53
    $region52: #{tpu_custom_call.1} parent=1 // pred_region
      %918 = vsyncadd [#allocation4], 0
      %s920 = sshll.u32 [#allocation13], 4
      %s921 = int_to_ptr.vmem [resolvable:$true] %s920
      %s922 = sshll.u32 %s6, 4
      %s923 = int_to_ptr.hbm [resolvable:$true] %s922
      %925 = dma.vmem_to_hbm [thread:$0]  %s921, 128, %s923, [#allocation4]
    $region53: #{tpu_custom_call.1} parent=1 // pred_fallthru
      _
    // Predicated region
    $region54: #{tpu_custom_call.1} parent=1 // pred_check
      _
    $region55: #{tpu_custom_call.1} parent=1 // pred_check_branch
      %927 = sbr.rel (0) target = $region57
    $region56: #{tpu_custom_call.1} parent=1 // pred_region
      %929 = dma.done [#allocation4], 128
    $region57: #{tpu_custom_call.1} parent=1 // pred_fallthru
      _
    %930 = vsyncpa [#allocation3], 1
    %931 = vsyncpa [#allocation6], 1
    %932 = vsyncpa [#allocation9], 1
    %933 = vsyncpa [#allocation12], 1
    %934 = vsyncpa [#allocation4], 1

</llo_original>
